<compile_context>
chip_gen: v7x
topology: tpu7x:2x2x1
jax: 0.10.0
libtpu: 0.0.40
codegen_flags: <defaults>
</compile_context>

<pallas_src>
import functools

import jax
import jax.numpy as jnp
from jax.experimental import pallas as pl
from jax.experimental.pallas import tpu as pltpu

EPS = 1e-5  # nn.LayerNorm default eps

# Minimum legal sublane tile per element byte-width (f32 -> 8, bf16 -> 16, int8/fp8 -> 32).
_MIN_SUBLANE_ROWS = {4: 8, 2: 16, 1: 32}


def _prenorm_linear_kernel(x_ref, g_ref, b_ref, w_ref, lin_b_ref, o_ref):
    # x_ref: (ROW_TILE, D)   g_ref/b_ref/lin_b_ref: (1, D)   w_ref: (D, D)

    # LayerNorm over the last dim, stats & affine in f32 (biased variance,
    # matching PyTorch LayerNorm).
    x = x_ref[...].astype(jnp.float32)
    mean = jnp.mean(x, axis=-1, keepdims=True)
    xc = x - mean
    var = jnp.mean(xc * xc, axis=-1, keepdims=True)
    inv = jax.lax.rsqrt(var + EPS)
    y = xc * inv * g_ref[...].astype(jnp.float32) + b_ref[...].astype(jnp.float32)

    # fn = Linear(D, D): feed the MXU operands in the weight's dtype (bf16 fast
    # path when enabled in the wrapper); accumulate in f32 on the MXU.
    out = jnp.dot(y.astype(w_ref.dtype), w_ref[...],
                  preferred_element_type=jnp.float32)
    out = out + lin_b_ref[...].astype(jnp.float32)
    o_ref[...] = out.astype(o_ref.dtype)


def _tpu_memory_model():
    """Return (vmem_limit_bytes, num_tensorcores) for the attached TPU."""
    vmem_cap = None
    try:
        vmem_cap = int(pltpu.get_tpu_info().vmem_capacity_bytes)
    except Exception:
        pass
    if vmem_cap is None or vmem_cap <= (64 << 20):
        # v7x-sized (64 MiB VMEM per TensorCore, 2 TCs/chip) or unknown:
        # conservative limit, assume two cores want work.
        return 48 << 20, 2
    # v5e / v6e: 128 MiB VMEM, single TensorCore (the grid is a serial loop).
    return min(96 << 20, vmem_cap - (16 << 20)), 1


def _pick_row_tile(rows, requested, D, x_bytes, out_bytes, w_bytes,
                   vmem_budget, num_cores):
    """Largest row tile that (a) fits the VMEM budget next to the resident
    weight, (b) keeps the MXU M dimension >= 128 where rows allow, and
    (c) only on dual-TensorCore chips leaves enough grid steps to shard."""
    # VMEM cost model: double-buffered x/out slabs + f32 in-kernel temporaries
    # (x, xc, y, out) per row; weight/affine params are single-buffered.
    per_row = 2 * D * (x_bytes + out_bytes) + 4 * D * 4
    resident = D * D * w_bytes + 3 * D * 4
    room = vmem_budget - resident
    if room < per_row * 8:
        # Weight cannot comfortably stay resident -- see K-tiling TODO above.
        room = per_row * 8
    vmem_cap_rows = room // per_row

    tile = min(requested, rows, vmem_cap_rows)

    if num_cores > 1:
        # Give both TensorCores work, but never shrink the MXU M dim below 128.
        while tile >= 2 * 128 and rows < num_cores * tile:
            tile //= 2

    if tile >= 128:
        tile = (tile // 128) * 128          # MXU-friendly M, legal for any dtype packing
    elif rows <= max(tile, 8):
        tile = rows                         # single block == full array dim (always legal)
    else:
        m = _MIN_SUBLANE_ROWS.get(x_bytes, 32)
        tile = max((tile // m) * m, m)      # respect dtype sublane packing
    return max(int(tile), 1)


@functools.partial(jax.jit, static_argnames=("row_tile", "matmul_in_bf16"))
def prenorm_linear(x, gamma, beta, w, lin_b, *, row_tile=1024,
                   matmul_in_bf16=False):
    """x: (B, N, D). Returns fn(LayerNorm(x)) with fn = Linear(D, D).

    `w` is in x @ w orientation (i.e. PyTorch Linear weight transposed)."""
    B, N, D = x.shape
    rows = B * N
    x2 = x.reshape(rows, D)

    gamma2 = gamma.reshape(1, D)
    beta2 = beta.reshape(1, D)
    lin_b2 = lin_b.reshape(1, D)

    if matmul_in_bf16:
        # Optional fast path: halve the resident weight + its DMA and use the
        # MXU bf16 rate; accumulation stays f32 via preferred_element_type.
        w_mm = w.astype(jnp.bfloat16)
    else:
        w_mm = w

    x_bytes = x.dtype.itemsize
    out_bytes = x.dtype.itemsize
    w_bytes = w_mm.dtype.itemsize

    vmem_limit, num_cores = _tpu_memory_model()
    tile = _pick_row_tile(rows, row_tile, D, x_bytes, out_bytes, w_bytes,
                          vmem_budget=vmem_limit - (4 << 20),
                          num_cores=num_cores)
    grid = (pl.cdiv(rows, tile),)   # partial last block: masked writeback, no host pad

    # Grid-invariant parameters never change block index -> single-buffer them
    # so the VMEM goes to larger row tiles instead.
    const_vec_spec = pl.BlockSpec((1, D), lambda i: (0, 0),
                                  pipeline_mode=pl.Buffered(1))
    w_spec = pl.BlockSpec((D, D), lambda i: (0, 0),
                          pipeline_mode=pl.Buffered(1))

    cost = pl.CostEstimate(
        flops=2 * rows * D * D,
        transcendentals=rows,  # one rsqrt per row
        bytes_accessed=rows * D * (x_bytes + out_bytes) + D * D * w_bytes + 3 * D * 4,
    )

    out2 = pl.pallas_call(
        _prenorm_linear_kernel,
        out_shape=jax.ShapeDtypeStruct((rows, D), x.dtype),
        grid_spec=pltpu.PrefetchScalarGridSpec(
            num_scalar_prefetch=0,
            grid=grid,
            in_specs=[
                pl.BlockSpec((tile, D), lambda i: (i, 0)),  # x rows (pipelined)
                const_vec_spec,                             # gamma
                const_vec_spec,                             # beta
                w_spec,                                     # linear weight
                const_vec_spec,                             # linear bias
            ],
            out_specs=pl.BlockSpec((tile, D), lambda i: (i, 0)),
        ),
        compiler_params=pltpu.CompilerParams(
            dimension_semantics=("parallel",),
            vmem_limit_bytes=vmem_limit,
        ),
        cost_estimate=cost,
    )(x2, gamma2, beta2, w_mm, lin_b2)

    return out2.reshape(B, N, D)


def _reference(x, gamma, beta, w, lin_b):
    xf = x.astype(jnp.float32)
    mean = jnp.mean(xf, axis=-1, keepdims=True)
    var = jnp.mean((xf - mean) ** 2, axis=-1, keepdims=True)
    y = (xf - mean) * jax.lax.rsqrt(var + EPS) * gamma + beta
    return (y @ w + lin_b).astype(x.dtype)


if __name__ == "__main__":
    key = jax.random.PRNGKey(0)
    D = 128  # keep the normalized dim lane-dense (multiple of 128)

    k_x, k_g, k_b, k_w, k_lb, k_x2 = jax.random.split(key, 6)

    # Deterministic synthetic parameters (random affine so the LayerNorm
    # scale/shift is non-trivial; PyTorch defaults would be gamma=1, beta=0).
    gamma = 1.0 + 0.1 * jax.random.normal(k_g, (D,), dtype=jnp.float32)
    beta = 0.1 * jax.random.normal(k_b, (D,), dtype=jnp.float32)
    w = jax.random.normal(k_w, (D, D), dtype=jnp.float32) / jnp.sqrt(D)
    lin_b = 0.1 * jax.random.normal(k_lb, (D,), dtype=jnp.float32)

    # Case 1: rows divisible by the tile (single full block, M=128 matmul).
    x = jax.random.normal(k_x, (2, 64, D), dtype=jnp.float32)
    out = jax.block_until_ready(prenorm_linear(x, gamma, beta, w, lin_b))
    ref = _reference(x, gamma, beta, w, lin_b)
    assert out.shape == x.shape
    assert jnp.allclose(out, ref, atol=1e-3, rtol=1e-3), "mismatch (divisible rows)"

    # Case 2: rows NOT divisible by the tile -- exercises the partial last
    # block / masked-writeback path that replaced the host-side jnp.pad.
    x2 = jax.random.normal(k_x2, (2, 70, D), dtype=jnp.float32)
    out2 = jax.block_until_ready(
        prenorm_linear(x2, gamma, beta, w, lin_b, row_tile=128))
    ref2 = _reference(x2, gamma, beta, w, lin_b)
    assert out2.shape == x2.shape
    assert jnp.allclose(out2, ref2, atol=1e-3, rtol=1e-3), "mismatch (partial block)"

    print("KERNEL_OK")
</pallas_src>

<mosaic_0001>
module attributes {stable_mosaic.version = 11 : i64} {
  func.func @_prenorm_linear_kernel(%arg0: i32, %arg1: memref<128x128xf32, #tpu.memory_space<vmem>>, %arg2: memref<1x128xf32, #tpu.memory_space<vmem>>, %arg3: memref<1x128xf32, #tpu.memory_space<vmem>>, %arg4: memref<128x128xf32, #tpu.memory_space<vmem>>, %arg5: memref<1x128xf32, #tpu.memory_space<vmem>>, %arg6: memref<128x128xf32, #tpu.memory_space<vmem>>) attributes {dimension_semantics = [#tpu.dimension_semantics<parallel>], iteration_bounds = array<i64: 1>, scalar_prefetch = 0 : i64, scratch_operands = 0 : i64, tpu.core_type = #tpu.core_type<tc>, window_params = [{transform_indices = @transform_0, window_bounds = array<i64: 128, 128>}, {pipeline_mode = #tpu.pipeline_mode<synchronous>, transform_indices = @transform_1, window_bounds = array<i64: 1, 128>}, {pipeline_mode = #tpu.pipeline_mode<synchronous>, transform_indices = @transform_2, window_bounds = array<i64: 1, 128>}, {pipeline_mode = #tpu.pipeline_mode<synchronous>, transform_indices = @transform_3, window_bounds = array<i64: 128, 128>}, {pipeline_mode = #tpu.pipeline_mode<synchronous>, transform_indices = @transform_4, window_bounds = array<i64: 1, 128>}, {transform_indices = @transform_5, window_bounds = array<i64: 128, 128>}]} {
    %c0 = arith.constant 0 : index
    %c0_0 = arith.constant 0 : index
    %0 = vector.load %arg1[%c0, %c0_0] : memref<128x128xf32, #tpu.memory_space<vmem>>, vector<128x128xf32>
    %cst = arith.constant dense<0.000000e+00> : vector<128xf32>
    %1 = vector.multi_reduction <add>, %0, %cst [1] : vector<128x128xf32> to vector<128xf32>
    %2 = vector.shape_cast %1 : vector<128xf32> to vector<128x1xf32>
    %cst_1 = arith.constant 1.280000e+02 : f32
    %3 = vector.broadcast %cst_1 : f32 to vector<128x1xf32>
    %4 = arith.divf %2, %3 : vector<128x1xf32>
    %5 = vector.broadcast %4 : vector<128x1xf32> to vector<128x128xf32>
    %6 = arith.subf %0, %5 : vector<128x128xf32>
    %7 = arith.mulf %6, %6 : vector<128x128xf32>
    %cst_2 = arith.constant dense<0.000000e+00> : vector<128xf32>
    %8 = vector.multi_reduction <add>, %7, %cst_2 [1] : vector<128x128xf32> to vector<128xf32>
    %9 = vector.shape_cast %8 : vector<128xf32> to vector<128x1xf32>
    %cst_3 = arith.constant 1.280000e+02 : f32
    %10 = vector.broadcast %cst_3 : f32 to vector<128x1xf32>
    %11 = arith.divf %9, %10 : vector<128x1xf32>
    %cst_4 = arith.constant 9.99999974E-6 : f32
    %12 = vector.broadcast %cst_4 : f32 to vector<128x1xf32>
    %13 = arith.addf %11, %12 : vector<128x1xf32>
    %14 = math.rsqrt %13 : vector<128x1xf32>
    %15 = vector.broadcast %14 : vector<128x1xf32> to vector<128x128xf32>
    %16 = arith.mulf %6, %15 : vector<128x128xf32>
    %c0_5 = arith.constant 0 : index
    %c0_6 = arith.constant 0 : index
    %17 = vector.load %arg2[%c0_5, %c0_6] : memref<1x128xf32, #tpu.memory_space<vmem>>, vector<1x128xf32>
    %18 = vector.broadcast %17 : vector<1x128xf32> to vector<128x128xf32>
    %19 = arith.mulf %16, %18 : vector<128x128xf32>
    %c0_7 = arith.constant 0 : index
    %c0_8 = arith.constant 0 : index
    %20 = vector.load %arg3[%c0_7, %c0_8] : memref<1x128xf32, #tpu.memory_space<vmem>>, vector<1x128xf32>
    %21 = vector.broadcast %20 : vector<1x128xf32> to vector<128x128xf32>
    %22 = arith.addf %19, %21 : vector<128x128xf32>
    %c0_9 = arith.constant 0 : index
    %c0_10 = arith.constant 0 : index
    %23 = vector.load %arg4[%c0_9, %c0_10] : memref<128x128xf32, #tpu.memory_space<vmem>>, vector<128x128xf32>
    %cst_11 = arith.constant dense<0.000000e+00> : vector<128x128xf32>
    %24 = tpu.matmul %22, %23, %cst_11 {dimension_numbers = #tpu.dot_dimension_numbers<[1], [0], [0], [1], [0, 0, 1, 1], [], []>} : vector<128x128xf32>, vector<128x128xf32>, vector<128x128xf32> -> vector<128x128xf32>
    %c0_12 = arith.constant 0 : index
    %c0_13 = arith.constant 0 : index
    %25 = vector.load %arg5[%c0_12, %c0_13] : memref<1x128xf32, #tpu.memory_space<vmem>>, vector<1x128xf32>
    %26 = vector.broadcast %25 : vector<1x128xf32> to vector<128x128xf32>
    %27 = arith.addf %24, %26 : vector<128x128xf32>
    %c0_14 = arith.constant 0 : index
    %c0_15 = arith.constant 0 : index
    %28 = vector.load %arg6[%c0_14, %c0_15] : memref<128x128xf32, #tpu.memory_space<vmem>>, vector<128x128xf32>
    tpu.vector_store %arg6[%c0_14, %c0_15], %27 {strides = array<i32>} : memref<128x128xf32, #tpu.memory_space<vmem>>, vector<128x128xf32>,
    return
  }
  func.func @transform_0(%arg0: i32) -> (i32, i32) {
    %c0_i32 = arith.constant 0 : i32
    %c0_i32_0 = arith.constant 0 : i32
    return %arg0, %c0_i32 : i32, i32
  }
  func.func @transform_1(%arg0: i32) -> (i32, i32) {
    %c0_i32 = arith.constant 0 : i32
    %c0_i32_0 = arith.constant 0 : i32
    %c0_i32_1 = arith.constant 0 : i32
    return %c0_i32, %c0_i32_0 : i32, i32
  }
  func.func @transform_2(%arg0: i32) -> (i32, i32) {
    %c0_i32 = arith.constant 0 : i32
    %c0_i32_0 = arith.constant 0 : i32
    %c0_i32_1 = arith.constant 0 : i32
    return %c0_i32, %c0_i32_0 : i32, i32
  }
  func.func @transform_3(%arg0: i32) -> (i32, i32) {
    %c0_i32 = arith.constant 0 : i32
    %c0_i32_0 = arith.constant 0 : i32
    %c0_i32_1 = arith.constant 0 : i32
    return %c0_i32, %c0_i32_0 : i32, i32
  }
  func.func @transform_4(%arg0: i32) -> (i32, i32) {
    %c0_i32 = arith.constant 0 : i32
    %c0_i32_0 = arith.constant 0 : i32
    %c0_i32_1 = arith.constant 0 : i32
    return %c0_i32, %c0_i32_0 : i32, i32
  }
  func.func @transform_5(%arg0: i32) -> (i32, i32) {
    %c0_i32 = arith.constant 0 : i32
    %c0_i32_0 = arith.constant 0 : i32
    return %arg0, %c0_i32 : i32, i32
  }
}

</mosaic_0001>

<llo_original>
// kernel: prenorm_linear.1
$region0: #{prenorm_linear.1}
  #allocation0 [shape = 'u32[]', space=smem, size = 0x4, offset = 0x4, fixed_abs, tag = 'smem constant byte address 0x4 - core index']
  #allocation1 [shape = 'u32[144,128]{1,0:T(1,128)}', space=vmem, size = 0x12000, scoped, tag = 'internal scratch']
  %s0 = inlined_call_operand.hbm [shape: f32[128,128], index: 0, kind: input, shape index: {}]
  %s1 = inlined_call_operand.vmem [shape: f32[1,128], index: 1, kind: input, shape index: {}]
  %s2 = inlined_call_operand.vmem [shape: f32[1,128], index: 2, kind: input, shape index: {}]
  %s3 = inlined_call_operand.hbm [shape: f32[128,128], index: 3, kind: input, shape index: {}]
  %s4 = inlined_call_operand.vmem [shape: f32[1,128], index: 4, kind: input, shape index: {}]
  %s5 = inlined_call_operand.hbm [shape: f32[128,128], index: 5, kind: output, shape index: {}]
  %s6 = sld [smem:[#allocation0]]
  $region38: #{prenorm_linear.1} parent=0
    _
  %s8 = ssub.s32 1, %s6
  %s9 = scalar_select 0, %s8, %s6
  $region1: #{prenorm_linear.1} parent=0
    #allocation2 [shape = 'u8[65536]{0}', space=vmem, size = 0x10000, scoped, tag = 'input window, operand 0, single buffered']
    #allocation3 [shape = 's32[1]{0}', space=sflag, size = 0x4, scoped, tag = 'scoped memory for prenorm_linear.1']
    #allocation4 [shape = 's32[1]{0}', space=sflag, size = 0x4, scoped, tag = 'scoped memory for prenorm_linear.1']
    #allocation5 [shape = 'u8[65536]{0}', space=vmem, size = 0x10000, scoped, tag = 'input window, operand 3, single buffered']
    #allocation6 [shape = 's32[1]{0}', space=sflag, size = 0x4, scoped, tag = 'scoped memory for prenorm_linear.1']
    #allocation7 [shape = 'u8[65536]{0}', space=vmem, size = 0x10000, scoped, tag = 'output window, operand 0, single buffered']
    %10 = vsyncpa [#allocation3], 0
    %11 = vsyncpa [#allocation6], 0
    %12 = vsyncpa [#allocation4], 0
    // Predicated region
    $region2: #{prenorm_linear.1} parent=1 // pred_check
      _
    $region3: #{prenorm_linear.1} parent=1 // pred_check_branch
      %14 = sbr.rel (0) target = $region5
    $region4: #{prenorm_linear.1} parent=1 // pred_region
      %s16 = ssub.s32 2048, 2048
      %17 = vsyncadd [#allocation3], %s16
      %s18 = sshll.u32 [#allocation2], 4
      %s19 = int_to_ptr.vmem [resolvable:$true] %s18
      %24 = dma.hbm_to_vmem [thread:$0]  %s0, 2048, %s19, [#allocation3], 128, 128, 8
    $region5: #{prenorm_linear.1} parent=1 // pred_fallthru
      _
    // Predicated region
    $region6: #{prenorm_linear.1} parent=1 // pred_check
      _
    $region7: #{prenorm_linear.1} parent=1 // pred_check_branch
      %26 = sbr.rel (0) target = $region9
    $region8: #{prenorm_linear.1} parent=1 // pred_region
      _
    $region9: #{prenorm_linear.1} parent=1 // pred_fallthru
      _
    // Predicated region
    $region10: #{prenorm_linear.1} parent=1 // pred_check
      _
    $region11: #{prenorm_linear.1} parent=1 // pred_check_branch
      %28 = sbr.rel (0) target = $region13
    $region12: #{prenorm_linear.1} parent=1 // pred_region
      _
    $region13: #{prenorm_linear.1} parent=1 // pred_fallthru
      _
    // Predicated region
    $region14: #{prenorm_linear.1} parent=1 // pred_check
      _
    $region15: #{prenorm_linear.1} parent=1 // pred_check_branch
      %30 = sbr.rel (0) target = $region17
    $region16: #{prenorm_linear.1} parent=1 // pred_region
      %s32 = ssub.s32 2048, 2048
      %33 = vsyncadd [#allocation6], %s32
      %s34 = sshll.u32 [#allocation5], 4
      %s35 = int_to_ptr.vmem [resolvable:$true] %s34
      %40 = dma.hbm_to_vmem [thread:$0]  %s3, 2048, %s35, [#allocation6], 128, 128, 8
    $region17: #{prenorm_linear.1} parent=1 // pred_fallthru
      _
    // Predicated region
    $region18: #{prenorm_linear.1} parent=1 // pred_check
      _
    $region19: #{prenorm_linear.1} parent=1 // pred_check_branch
      %42 = sbr.rel (0) target = $region21
    $region20: #{prenorm_linear.1} parent=1 // pred_region
      _
    $region21: #{prenorm_linear.1} parent=1 // pred_fallthru
      _
    // Predicated region
    $region22: #{prenorm_linear.1} parent=1 // pred_check
      _
    $region23: #{prenorm_linear.1} parent=1 // pred_check_branch
      %44 = sbr.rel (0) target = $region25
    $region24: #{prenorm_linear.1} parent=1 // pred_region
      %45 = dma.done [#allocation3], 2048
    $region25: #{prenorm_linear.1} parent=1 // pred_fallthru
      _
    // Predicated region
    $region26: #{prenorm_linear.1} parent=1 // pred_check
      _
    $region27: #{prenorm_linear.1} parent=1 // pred_check_branch
      %47 = sbr.rel (0) target = $region29
    $region28: #{prenorm_linear.1} parent=1 // pred_region
      %48 = dma.done [#allocation6], 2048
    $region29: #{prenorm_linear.1} parent=1 // pred_fallthru
      _
    %v49 = vld [vmem:[#allocation2] sm:$0xff]
    %v50 = vld [vmem:[#allocation2 + $0x8] sm:$0xff]
    %v51 = vld [vmem:[#allocation2 + $0x10] sm:$0xff]
    %v52 = vld [vmem:[#allocation2 + $0x18] sm:$0xff]
    %v53 = vld [vmem:[#allocation2 + $0x20] sm:$0xff]
    %v54 = vld [vmem:[#allocation2 + $0x28] sm:$0xff]
    %v55 = vld [vmem:[#allocation2 + $0x30] sm:$0xff]
    %v56 = vld [vmem:[#allocation2 + $0x38] sm:$0xff]
    %v57 = vld [vmem:[#allocation2 + $0x40] sm:$0xff]
    %v58 = vld [vmem:[#allocation2 + $0x48] sm:$0xff]
    %v59 = vld [vmem:[#allocation2 + $0x50] sm:$0xff]
    %v60 = vld [vmem:[#allocation2 + $0x58] sm:$0xff]
    %v61 = vld [vmem:[#allocation2 + $0x60] sm:$0xff]
    %v62 = vld [vmem:[#allocation2 + $0x68] sm:$0xff]
    %v63 = vld [vmem:[#allocation2 + $0x70] sm:$0xff]
    %v64 = vld [vmem:[#allocation2 + $0x78] sm:$0xff]
    %65 = vadd.xlane.f32.xlu0 %v49
    %v66 = vpop.xlane.xlu0 %65
    %67 = vadd.xlane.f32.xlu0 %v50
    %v68 = vpop.xlane.xlu0 %67
    %69 = vadd.xlane.f32.xlu0 %v51
    %v70 = vpop.xlane.xlu0 %69
    %71 = vadd.xlane.f32.xlu0 %v52
    %v72 = vpop.xlane.xlu0 %71
    %73 = vadd.xlane.f32.xlu0 %v53
    %v74 = vpop.xlane.xlu0 %73
    %75 = vadd.xlane.f32.xlu0 %v54
    %v76 = vpop.xlane.xlu0 %75
    %77 = vadd.xlane.f32.xlu0 %v55
    %v78 = vpop.xlane.xlu0 %77
    %79 = vadd.xlane.f32.xlu0 %v56
    %v80 = vpop.xlane.xlu0 %79
    %81 = vadd.xlane.f32.xlu0 %v57
    %v82 = vpop.xlane.xlu0 %81
    %83 = vadd.xlane.f32.xlu0 %v58
    %v84 = vpop.xlane.xlu0 %83
    %85 = vadd.xlane.f32.xlu0 %v59
    %v86 = vpop.xlane.xlu0 %85
    %87 = vadd.xlane.f32.xlu0 %v60
    %v88 = vpop.xlane.xlu0 %87
    %89 = vadd.xlane.f32.xlu0 %v61
    %v90 = vpop.xlane.xlu0 %89
    %91 = vadd.xlane.f32.xlu0 %v62
    %v92 = vpop.xlane.xlu0 %91
    %93 = vadd.xlane.f32.xlu0 %v63
    %v94 = vpop.xlane.xlu0 %93
    %95 = vadd.xlane.f32.xlu0 %v64
    %v96 = vpop.xlane.xlu0 %95
    %v97 = vrcp.pop 128.0
    %v98 = vmul.f32 %v66, %v97
    %v99 = vmul.f32 %v68, %v97
    %v100 = vmul.f32 %v70, %v97
    %v101 = vmul.f32 %v72, %v97
    %v102 = vmul.f32 %v74, %v97
    %v103 = vmul.f32 %v76, %v97
    %v104 = vmul.f32 %v78, %v97
    %v105 = vmul.f32 %v80, %v97
    %v106 = vmul.f32 %v82, %v97
    %v107 = vmul.f32 %v84, %v97
    %v108 = vmul.f32 %v86, %v97
    %v109 = vmul.f32 %v88, %v97
    %v110 = vmul.f32 %v90, %v97
    %v111 = vmul.f32 %v92, %v97
    %v112 = vmul.f32 %v94, %v97
    %v113 = vmul.f32 %v96, %v97
    %v114 = vsub.f32 %v49, %v98
    %v115 = vsub.f32 %v50, %v99
    %v116 = vsub.f32 %v51, %v100
    %v117 = vsub.f32 %v52, %v101
    %v118 = vsub.f32 %v53, %v102
    %v119 = vsub.f32 %v54, %v103
    %v120 = vsub.f32 %v55, %v104
    %v121 = vsub.f32 %v56, %v105
    %v122 = vsub.f32 %v57, %v106
    %v123 = vsub.f32 %v58, %v107
    %v124 = vsub.f32 %v59, %v108
    %v125 = vsub.f32 %v60, %v109
    %v126 = vsub.f32 %v61, %v110
    %v127 = vsub.f32 %v62, %v111
    %v128 = vsub.f32 %v63, %v112
    %v129 = vsub.f32 %v64, %v113
    %v130 = vmul.f32 %v114, %v114
    %v131 = vmul.f32 %v115, %v115
    %v132 = vmul.f32 %v116, %v116
    %v133 = vmul.f32 %v117, %v117
    %v134 = vmul.f32 %v118, %v118
    %v135 = vmul.f32 %v119, %v119
    %v136 = vmul.f32 %v120, %v120
    %v137 = vmul.f32 %v121, %v121
    %v138 = vmul.f32 %v122, %v122
    %v139 = vmul.f32 %v123, %v123
    %v140 = vmul.f32 %v124, %v124
    %v141 = vmul.f32 %v125, %v125
    %v142 = vmul.f32 %v126, %v126
    %v143 = vmul.f32 %v127, %v127
    %v144 = vmul.f32 %v128, %v128
    %v145 = vmul.f32 %v129, %v129
    %146 = vadd.xlane.f32.xlu0 %v130
    %v147 = vpop.xlane.xlu0 %146
    %148 = vadd.xlane.f32.xlu0 %v131
    %v149 = vpop.xlane.xlu0 %148
    %150 = vadd.xlane.f32.xlu0 %v132
    %v151 = vpop.xlane.xlu0 %150
    %152 = vadd.xlane.f32.xlu0 %v133
    %v153 = vpop.xlane.xlu0 %152
    %154 = vadd.xlane.f32.xlu0 %v134
    %v155 = vpop.xlane.xlu0 %154
    %156 = vadd.xlane.f32.xlu0 %v135
    %v157 = vpop.xlane.xlu0 %156
    %158 = vadd.xlane.f32.xlu0 %v136
    %v159 = vpop.xlane.xlu0 %158
    %160 = vadd.xlane.f32.xlu0 %v137
    %v161 = vpop.xlane.xlu0 %160
    %162 = vadd.xlane.f32.xlu0 %v138
    %v163 = vpop.xlane.xlu0 %162
    %164 = vadd.xlane.f32.xlu0 %v139
    %v165 = vpop.xlane.xlu0 %164
    %166 = vadd.xlane.f32.xlu0 %v140
    %v167 = vpop.xlane.xlu0 %166
    %168 = vadd.xlane.f32.xlu0 %v141
    %v169 = vpop.xlane.xlu0 %168
    %170 = vadd.xlane.f32.xlu0 %v142
    %v171 = vpop.xlane.xlu0 %170
    %172 = vadd.xlane.f32.xlu0 %v143
    %v173 = vpop.xlane.xlu0 %172
    %174 = vadd.xlane.f32.xlu0 %v144
    %v175 = vpop.xlane.xlu0 %174
    %176 = vadd.xlane.f32.xlu0 %v145
    %v177 = vpop.xlane.xlu0 %176
    %v178 = vmul.f32 %v147, %v97
    %v179 = vmul.f32 %v149, %v97
    %v180 = vmul.f32 %v151, %v97
    %v181 = vmul.f32 %v153, %v97
    %v182 = vmul.f32 %v155, %v97
    %v183 = vmul.f32 %v157, %v97
    %v184 = vmul.f32 %v159, %v97
    %v185 = vmul.f32 %v161, %v97
    %v186 = vmul.f32 %v163, %v97
    %v187 = vmul.f32 %v165, %v97
    %v188 = vmul.f32 %v167, %v97
    %v189 = vmul.f32 %v169, %v97
    %v190 = vmul.f32 %v171, %v97
    %v191 = vmul.f32 %v173, %v97
    %v192 = vmul.f32 %v175, %v97
    %v193 = vmul.f32 %v177, %v97
    %v194 = vadd.f32 %v178, 1e-05
    %v195 = vadd.f32 %v179, 1e-05
    %v196 = vadd.f32 %v180, 1e-05
    %v197 = vadd.f32 %v181, 1e-05
    %v198 = vadd.f32 %v182, 1e-05
    %v199 = vadd.f32 %v183, 1e-05
    %v200 = vadd.f32 %v184, 1e-05
    %v201 = vadd.f32 %v185, 1e-05
    %v202 = vadd.f32 %v186, 1e-05
    %v203 = vadd.f32 %v187, 1e-05
    %v204 = vadd.f32 %v188, 1e-05
    %v205 = vadd.f32 %v189, 1e-05
    %v206 = vadd.f32 %v190, 1e-05
    %v207 = vadd.f32 %v191, 1e-05
    %v208 = vadd.f32 %v192, 1e-05
    %v209 = vadd.f32 %v193, 1e-05
    %v210 = vrsqrt.pop %v194
    %v211 = vrsqrt.pop %v195
    %v212 = vrsqrt.pop %v196
    %v213 = vrsqrt.pop %v197
    %v214 = vrsqrt.pop %v198
    %v215 = vrsqrt.pop %v199
    %v216 = vrsqrt.pop %v200
    %v217 = vrsqrt.pop %v201
    %v218 = vrsqrt.pop %v202
    %v219 = vrsqrt.pop %v203
    %v220 = vrsqrt.pop %v204
    %v221 = vrsqrt.pop %v205
    %v222 = vrsqrt.pop %v206
    %v223 = vrsqrt.pop %v207
    %v224 = vrsqrt.pop %v208
    %v225 = vrsqrt.pop %v209
    %v226 = vmul.f32 %v114, %v210
    %v227 = vmul.f32 %v115, %v211
    %v228 = vmul.f32 %v116, %v212
    %v229 = vmul.f32 %v117, %v213
    %v230 = vmul.f32 %v118, %v214
    %v231 = vmul.f32 %v119, %v215
    %v232 = vmul.f32 %v120, %v216
    %v233 = vmul.f32 %v121, %v217
    %v234 = vmul.f32 %v122, %v218
    %v235 = vmul.f32 %v123, %v219
    %v236 = vmul.f32 %v124, %v220
    %v237 = vmul.f32 %v125, %v221
    %v238 = vmul.f32 %v126, %v222
    %v239 = vmul.f32 %v127, %v223
    %v240 = vmul.f32 %v128, %v224
    %v241 = vmul.f32 %v129, %v225
    %v242 = vld [vmem:[%s1] sm:$0x1]
    %v244 = vlaneseq
    %v245 = vshrl.u32 %v244, 7
    %v246 = vsub.s32 0, %v245
    %v247 = vrot.slane %v242, %v246
    %v249 = vmul.f32 %v226, %v247
    %v250 = vmul.f32 %v227, %v247
    %v251 = vmul.f32 %v228, %v247
    %v252 = vmul.f32 %v229, %v247
    %v253 = vmul.f32 %v230, %v247
    %v254 = vmul.f32 %v231, %v247
    %v255 = vmul.f32 %v232, %v247
    %v256 = vmul.f32 %v233, %v247
    %v257 = vmul.f32 %v234, %v247
    %v258 = vmul.f32 %v235, %v247
    %v259 = vmul.f32 %v236, %v247
    %v260 = vmul.f32 %v237, %v247
    %v261 = vmul.f32 %v238, %v247
    %v262 = vmul.f32 %v239, %v247
    %v263 = vmul.f32 %v240, %v247
    %v264 = vmul.f32 %v241, %v247
    %v265 = vld [vmem:[%s2] sm:$0x1]
    %v267 = vlaneseq
    %v268 = vshrl.u32 %v267, 7
    %v269 = vsub.s32 0, %v268
    %v270 = vrot.slane %v265, %v269
    %v272 = vadd.f32 %v249, %v270
    %v273 = vadd.f32 %v250, %v270
    %v274 = vadd.f32 %v251, %v270
    %v275 = vadd.f32 %v252, %v270
    %v276 = vadd.f32 %v253, %v270
    %v277 = vadd.f32 %v254, %v270
    %v278 = vadd.f32 %v255, %v270
    %v279 = vadd.f32 %v256, %v270
    %v280 = vadd.f32 %v257, %v270
    %v281 = vadd.f32 %v258, %v270
    %v282 = vadd.f32 %v259, %v270
    %v283 = vadd.f32 %v260, %v270
    %v284 = vadd.f32 %v261, %v270
    %v285 = vadd.f32 %v262, %v270
    %v286 = vadd.f32 %v263, %v270
    %v287 = vadd.f32 %v264, %v270
    %v288 = vld [vmem:[#allocation5] sm:$0xff]
    %v289 = vld [vmem:[#allocation5 + $0x8] sm:$0xff]
    %v290 = vld [vmem:[#allocation5 + $0x10] sm:$0xff]
    %v291 = vld [vmem:[#allocation5 + $0x18] sm:$0xff]
    %v292 = vld [vmem:[#allocation5 + $0x20] sm:$0xff]
    %v293 = vld [vmem:[#allocation5 + $0x28] sm:$0xff]
    %v294 = vld [vmem:[#allocation5 + $0x30] sm:$0xff]
    %v295 = vld [vmem:[#allocation5 + $0x38] sm:$0xff]
    %v296 = vld [vmem:[#allocation5 + $0x40] sm:$0xff]
    %v297 = vld [vmem:[#allocation5 + $0x48] sm:$0xff]
    %v298 = vld [vmem:[#allocation5 + $0x50] sm:$0xff]
    %v299 = vld [vmem:[#allocation5 + $0x58] sm:$0xff]
    %v300 = vld [vmem:[#allocation5 + $0x60] sm:$0xff]
    %v301 = vld [vmem:[#allocation5 + $0x68] sm:$0xff]
    %v302 = vld [vmem:[#allocation5 + $0x70] sm:$0xff]
    %v303 = vld [vmem:[#allocation5 + $0x78] sm:$0xff]
    %v304 = vld [vmem:[%s4] sm:$0x1]
    %v306 = vlaneseq
    %v307 = vshrl.u32 %v306, 7
    %v308 = vsub.s32 0, %v307
    %v309 = vrot.slane %v304, %v308
    %311 = vmatprep.subr.mxu0 0.0
    %312 = vmatpush1.msra.mxu0 %v288
    %313 = vmatprep.subr.mxu0 0.0
    %314 = vmatpush1.msra.mxu0 %v289
    %315 = vmatprep.subr.mxu0 0.0
    %316 = vmatpush1.msra.mxu0 %v290
    %317 = vmatprep.subr.mxu0 0.0
    %318 = vmatpush1.msra.mxu0 %v291
    %319 = vmatprep.subr.mxu0 0.0
    %320 = vmatpush1.msra.mxu0 %v292
    %321 = vmatprep.subr.mxu0 0.0
    %322 = vmatpush1.msra.mxu0 %v293
    %323 = vmatprep.subr.mxu0 0.0
    %324 = vmatpush1.msra.mxu0 %v294
    %325 = vmatprep.subr.mxu0 0.0
    %326 = vmatpush1.msra.mxu0 %v295
    %327 = vmatprep.subr.mxu0 0.0
    %328 = vmatpush1.msra.mxu0 %v296
    %329 = vmatprep.subr.mxu0 0.0
    %330 = vmatpush1.msra.mxu0 %v297
    %331 = vmatprep.subr.mxu0 0.0
    %332 = vmatpush1.msra.mxu0 %v298
    %333 = vmatprep.subr.mxu0 0.0
    %334 = vmatpush1.msra.mxu0 %v299
    %335 = vmatprep.subr.mxu0 0.0
    %336 = vmatpush1.msra.mxu0 %v300
    %337 = vmatprep.subr.mxu0 0.0
    %338 = vmatpush1.msra.mxu0 %v301
    %339 = vmatprep.subr.mxu0 0.0
    %340 = vmatpush1.msra.mxu0 %v302
    %341 = vmatprep.subr.mxu0 0.0
    %342 = vmatpush1.msra.mxu0 %v303
    %343 = vmatprep.subr.mxu0 0.0
    %344 = vmatpush1.msra.mxu0 0.0
    %345 = vmatprep.subr.mxu0 0.0
    %346 = vmatpush1.msra.mxu0 0.0
    %347 = vmatprep.subr.mxu0 0.0
    %348 = vmatpush1.msra.mxu0 0.0
    %349 = vmatprep.subr.mxu0 0.0
    %350 = vmatpush1.msra.mxu0 0.0
    %351 = vmatprep.subr.mxu0 0.0
    %352 = vmatpush1.msra.mxu0 0.0
    %353 = vmatprep.subr.mxu0 0.0
    %354 = vmatpush1.msra.mxu0 0.0
    %355 = vmatprep.subr.mxu0 0.0
    %356 = vmatpush1.msra.mxu0 0.0
    %357 = vmatprep.subr.mxu0 0.0
    %358 = vmatpush1.msra.mxu0 0.0
    %359 = vmatprep.subr.mxu0 0.0
    %360 = vmatpush1.msra.mxu0 0.0
    %361 = vmatprep.subr.mxu0 0.0
    %362 = vmatpush1.msra.mxu0 0.0
    %363 = vmatprep.subr.mxu0 0.0
    %364 = vmatpush1.msra.mxu0 0.0
    %365 = vmatprep.subr.mxu0 0.0
    %366 = vmatpush1.msra.mxu0 0.0
    %367 = vmatprep.subr.mxu0 0.0
    %368 = vmatpush1.msra.mxu0 0.0
    %369 = vmatprep.subr.mxu0 0.0
    %370 = vmatpush1.msra.mxu0 0.0
    %371 = vmatprep.subr.mxu0 0.0
    %372 = vmatpush1.msra.mxu0 0.0
    %373 = vmatprep.subr.mxu0 0.0
    %374 = vmatpush1.msra.mxu0 0.0
    %375 = vmatprep.mubr.f32.mxu0 0.0
    %376 = vmatmul.mubr.f32.gmra.mrb[0].mxu0 %v272
    %v377 = vpop.f32.mrb[0].mxu0
    %v378 = vadd.f32 %v309, %v377
    %v379 = vpop.f32.mrb[0].mxu0
    %380 = vmatprep.mubr.f32.mxu0 0.0
    %381 = vmatmul.mubr.f32.gmra.mrb[0].mxu0 %v273
    %v382 = vpop.f32.mrb[0].mxu0
    %v383 = vadd.f32 %v309, %v382
    %v384 = vpop.f32.mrb[0].mxu0
    %385 = vmatprep.mubr.f32.mxu0 0.0
    %386 = vmatmul.mubr.f32.gmra.mrb[0].mxu0 %v274
    %v387 = vpop.f32.mrb[0].mxu0
    %v388 = vadd.f32 %v309, %v387
    %v389 = vpop.f32.mrb[0].mxu0
    %390 = vmatprep.mubr.f32.mxu0 0.0
    %391 = vmatmul.mubr.f32.gmra.mrb[0].mxu0 %v275
    %v392 = vpop.f32.mrb[0].mxu0
    %v393 = vadd.f32 %v309, %v392
    %v394 = vpop.f32.mrb[0].mxu0
    %395 = vmatprep.mubr.f32.mxu0 0.0
    %396 = vmatmul.mubr.f32.gmra.mrb[0].mxu0 %v276
    %v397 = vpop.f32.mrb[0].mxu0
    %v398 = vadd.f32 %v309, %v397
    %v399 = vpop.f32.mrb[0].mxu0
    %400 = vmatprep.mubr.f32.mxu0 0.0
    %401 = vmatmul.mubr.f32.gmra.mrb[0].mxu0 %v277
    %v402 = vpop.f32.mrb[0].mxu0
    %v403 = vadd.f32 %v309, %v402
    %v404 = vpop.f32.mrb[0].mxu0
    %405 = vmatprep.mubr.f32.mxu0 0.0
    %406 = vmatmul.mubr.f32.gmra.mrb[0].mxu0 %v278
    %v407 = vpop.f32.mrb[0].mxu0
    %v408 = vadd.f32 %v309, %v407
    %v409 = vpop.f32.mrb[0].mxu0
    %410 = vmatprep.mubr.f32.mxu0 0.0
    %411 = vmatmul.mubr.f32.gmra.mrb[0].mxu0 %v279
    %v412 = vpop.f32.mrb[0].mxu0
    %v413 = vadd.f32 %v309, %v412
    %v414 = vpop.f32.mrb[0].mxu0
    %415 = vmatprep.mubr.f32.mxu0 0.0
    %416 = vmatmul.mubr.f32.gmra.mrb[0].mxu0 %v280
    %v417 = vpop.f32.mrb[0].mxu0
    %v418 = vadd.f32 %v309, %v417
    %v419 = vpop.f32.mrb[0].mxu0
    %420 = vmatprep.mubr.f32.mxu0 0.0
    %421 = vmatmul.mubr.f32.gmra.mrb[0].mxu0 %v281
    %v422 = vpop.f32.mrb[0].mxu0
    %v423 = vadd.f32 %v309, %v422
    %v424 = vpop.f32.mrb[0].mxu0
    %425 = vmatprep.mubr.f32.mxu0 0.0
    %426 = vmatmul.mubr.f32.gmra.mrb[0].mxu0 %v282
    %v427 = vpop.f32.mrb[0].mxu0
    %v428 = vadd.f32 %v309, %v427
    %v429 = vpop.f32.mrb[0].mxu0
    %430 = vmatprep.mubr.f32.mxu0 0.0
    %431 = vmatmul.mubr.f32.gmra.mrb[0].mxu0 %v283
    %v432 = vpop.f32.mrb[0].mxu0
    %v433 = vadd.f32 %v309, %v432
    %v434 = vpop.f32.mrb[0].mxu0
    %435 = vmatprep.mubr.f32.mxu0 0.0
    %436 = vmatmul.mubr.f32.gmra.mrb[0].mxu0 %v284
    %v437 = vpop.f32.mrb[0].mxu0
    %v438 = vadd.f32 %v309, %v437
    %v439 = vpop.f32.mrb[0].mxu0
    %440 = vmatprep.mubr.f32.mxu0 0.0
    %441 = vmatmul.mubr.f32.gmra.mrb[0].mxu0 %v285
    %v442 = vpop.f32.mrb[0].mxu0
    %v443 = vadd.f32 %v309, %v442
    %v444 = vpop.f32.mrb[0].mxu0
    %445 = vmatprep.mubr.f32.mxu0 0.0
    %446 = vmatmul.mubr.f32.gmra.mrb[0].mxu0 %v286
    %v447 = vpop.f32.mrb[0].mxu0
    %v448 = vadd.f32 %v309, %v447
    %v449 = vpop.f32.mrb[0].mxu0
    %450 = vmatprep.mubr.f32.mxu0 0.0
    %451 = vmatmul.mubr.f32.gmra.mrb[0].mxu0 %v287
    %v452 = vpop.f32.mrb[0].mxu0
    %v453 = vadd.f32 %v309, %v452
    %v454 = vpop.f32.mrb[0].mxu0
    %455 = vdwg.mxu0
    %456 = vst [vmem:[#allocation7] sm:$0xff] %v378
    %457 = vst [vmem:[#allocation7 + $0x8] sm:$0xff] %v383
    %458 = vst [vmem:[#allocation7 + $0x10] sm:$0xff] %v388
    %459 = vst [vmem:[#allocation7 + $0x18] sm:$0xff] %v393
    %460 = vst [vmem:[#allocation7 + $0x20] sm:$0xff] %v398
    %461 = vst [vmem:[#allocation7 + $0x28] sm:$0xff] %v403
    %462 = vst [vmem:[#allocation7 + $0x30] sm:$0xff] %v408
    %463 = vst [vmem:[#allocation7 + $0x38] sm:$0xff] %v413
    %464 = vst [vmem:[#allocation7 + $0x40] sm:$0xff] %v418
    %465 = vst [vmem:[#allocation7 + $0x48] sm:$0xff] %v423
    %466 = vst [vmem:[#allocation7 + $0x50] sm:$0xff] %v428
    %467 = vst [vmem:[#allocation7 + $0x58] sm:$0xff] %v433
    %468 = vst [vmem:[#allocation7 + $0x60] sm:$0xff] %v438
    %469 = vst [vmem:[#allocation7 + $0x68] sm:$0xff] %v443
    %470 = vst [vmem:[#allocation7 + $0x70] sm:$0xff] %v448
    %471 = vst [vmem:[#allocation7 + $0x78] sm:$0xff] %v453
    // Predicated region
    $region30: #{prenorm_linear.1} parent=1 // pred_check
      _
    $region31: #{prenorm_linear.1} parent=1 // pred_check_branch
      %473 = sbr.rel (0) target = $region33
    $region32: #{prenorm_linear.1} parent=1 // pred_region
      %s475 = ssub.s32 2048, 2048
      %476 = vsyncadd [#allocation4], %s475
      %s477 = sshll.u32 [#allocation7], 4
      %s478 = int_to_ptr.vmem [resolvable:$true] %s477
      %483 = dma.vmem_to_hbm [thread:$0]  %s478, 2048, %s5, [#allocation4], 128, 128, 8
    $region33: #{prenorm_linear.1} parent=1 // pred_fallthru
      _
    // Predicated region
    $region34: #{prenorm_linear.1} parent=1 // pred_check
      _
    $region35: #{prenorm_linear.1} parent=1 // pred_check_branch
      %485 = sbr.rel (0) target = $region37
    $region36: #{prenorm_linear.1} parent=1 // pred_region
      %486 = dma.done [#allocation4], 2048
    $region37: #{prenorm_linear.1} parent=1 // pred_fallthru
      _
    %487 = vsyncpa [#allocation3], 1
    %488 = vsyncpa [#allocation6], 1
    %489 = vsyncpa [#allocation4], 1

</llo_original>
